<compile_context>
chip_gen: v6e
topology: v6e:2x2x1
jax: 0.10.0
libtpu: 0.0.40
codegen_flags: <defaults>
</compile_context>

<pallas_src>
import jax
import jax.numpy as jnp
from jax.experimental import pallas as pl
from jax.experimental.pallas import tpu as pltpu


def _sigmoid(x):
    # Sign-split logistic: the exp argument is always <= 0 (no overflow to inf).
    ex = jnp.exp(-jnp.abs(x))
    return jnp.where(x >= 0.0, 1.0, ex) / (1.0 + ex)


def _cross_fuse_kernel(e1_ref, e2_ref, w1a_ref, w1b_ref, w2a_ref, w2b_ref, out_ref):
    bt, c, n = e1_ref.shape
    inv_n = 1.0 / n

    e1 = e1_ref[...].astype(jnp.float32)           # (bt, c, n)
    e2 = e2_ref[...].astype(jnp.float32)           # (bt, c, n)

    def softmax_last(x):
        m = jnp.max(x, axis=-1, keepdims=True)
        ex = jnp.exp(x - m)
        # approx reciprocal runs on the EUP slot (otherwise idle in this kernel)
        return ex * pl.reciprocal(jnp.sum(ex, axis=-1, keepdims=True), approx=True)

    sm1 = softmax_last(e1)                         # softmax(emb1_reshape, dim=-1)
    sm2 = softmax_last(e2)                         # softmax(emb2_reshape, dim=2)
    mean1 = jnp.mean(e1, axis=-1, keepdims=True)   # (bt, c, 1)
    mean2 = jnp.mean(e2, axis=-1, keepdims=True)   # (bt, c, 1)

    # means (over dim=2 / dim=3) of the outer-product sum, reduced analytically
    row = e1 * inv_n + mean2 * sm1                 # (bt, c, n)
    col = sm2 * mean1 + e2 * inv_n                 # (bt, c, n)

    inner1 = e1 * row + e1                         # emb_inner1
    inner2 = e2 * col + e2                         # emb_inner2

    # global average pool over spatial, kept per branch (no sublane concat:
    # the fc weights are pre-split per branch in the wrapper).
    m1 = jnp.mean(inner1, axis=-1)                 # (bt, c)
    m2 = jnp.mean(inner2, axis=-1)                 # (bt, c)

    # fc: Linear(2c -> r, no bias) -> ReLU -> Linear(r -> 2c, no bias) -> Sigmoid,
    # batched across the batch tile so the MXU never sees an N=1 matvec.
    nt = (((1,), (1,)), ((), ()))                  # contract last dim vs last dim
    nn = (((1,), (0,)), ((), ()))                  # standard matmul
    hmid = (jax.lax.dot_general(m1, w1a_ref[...], nt, preferred_element_type=jnp.float32)
            + jax.lax.dot_general(m2, w1b_ref[...], nt, preferred_element_type=jnp.float32))
    hmid = jnp.maximum(hmid, 0.0)                  # (bt, r)
    mask1 = _sigmoid(jax.lax.dot_general(hmid, w2a_ref[...], nn,
                                         preferred_element_type=jnp.float32))   # (bt, c)
    mask2 = _sigmoid(jax.lax.dot_general(hmid, w2b_ref[...], nn,
                                         preferred_element_type=jnp.float32))   # (bt, c)

    # emb = emb_row_col * mask + emb_row_col == emb_row_col * (mask + 1)
    out_ref[:, :c, :] = (inner1 * (mask1[:, :, None] + 1.0)).astype(out_ref.dtype)
    out_ref[:, c:, :] = (inner2 * (mask2[:, :, None] + 1.0)).astype(out_ref.dtype)


def cross_fuse(emb1, emb2, w1, w2, *, batch_tile=None):
    """emb1, emb2: (b, c, h, w) NCHW (f32 or bf16).
    w1: (2c//16, 2c), w2: (2c, 2c//16) -- torch nn.Linear layout, bias=False."""
    b, c, h, w_sp = emb1.shape
    n = h * w_sp
    c2 = 2 * c
    r = w1.shape[0]

    if batch_tile is None:
        # Fold the batch into as few, as large grid steps as possible (launch
        # overhead ~0.35 us/step); when b allows, keep 2 "parallel" steps so
        # both v7x TensorCores are used (v5e/v6e have a single TC).
        batch_tile = b if (b <= 2 or b % 2 != 0) else b // 2
    assert b % batch_tile == 0, "batch_tile must divide the batch size"
    grid = (b // batch_tile,)

    # Keep the caller's dtype end-to-end: bf16 I/O halves HBM traffic; the
    # kernel upcasts to f32 internally for softmax / fc math.
    e1 = emb1.reshape(b, c, n)
    e2 = emb2.reshape(b, c, n)

    w1f = w1.astype(jnp.float32)
    w2f = w2.astype(jnp.float32)
    # Pre-split / pre-transpose fc weights per branch: lane-dense (r, c) blocks,
    # no in-kernel concat or transpose.
    w1a, w1b = w1f[:, :c], w1f[:, c:]
    w2a, w2b = w2f[:c, :].T, w2f[c:, :].T

    itemsize = jnp.dtype(e1.dtype).itemsize
    block_bytes = (2 * batch_tile * c * n + batch_tile * c2 * n) * itemsize + 4 * r * c * 4
    cparams = dict(dimension_semantics=("parallel",))
    # Raise the scoped-VMEM limit only when the double-buffered working set
    # needs it (defaults: v5e 16 MiB, v6e/v7x 32 MiB scoped).
    vmem_needed = 2 * block_bytes
    if vmem_needed > 32 * 1024 * 1024:
        cparams["vmem_limit_bytes"] = int(min(100 * 1024 * 1024, vmem_needed + (8 << 20)))
    # TODO(synk): for very large c*n (e.g. c=256, n=56*56 on v7x's 64 MiB VMEM),
    # split the global-pool + fc mask into a cheap first pass so this main
    # elementwise pass can additionally be tiled along the channel axis.

    elems = b * c * n
    cost = pl.CostEstimate(
        flops=int(16 * elems + 2 * b * (2 * c * r + 2 * r * c)),
        transcendentals=int(2 * elems + b * c2),
        bytes_accessed=int((2 * b * c * n + b * c2 * n) * itemsize + 4 * r * c * 4),
    )

    out = pl.pallas_call(
        _cross_fuse_kernel,
        out_shape=jax.ShapeDtypeStruct((b, c2, n), e1.dtype),
        grid=grid,
        in_specs=[
            pl.BlockSpec((batch_tile, c, n), lambda i: (i, 0, 0)),
            pl.BlockSpec((batch_tile, c, n), lambda i: (i, 0, 0)),
            pl.BlockSpec((r, c), lambda i: (0, 0)),
            pl.BlockSpec((r, c), lambda i: (0, 0)),
            pl.BlockSpec((r, c), lambda i: (0, 0)),
            pl.BlockSpec((r, c), lambda i: (0, 0)),
        ],
        out_specs=pl.BlockSpec((batch_tile, c2, n), lambda i: (i, 0, 0)),
        compiler_params=pltpu.CompilerParams(**cparams),
        cost_estimate=cost,
    )(e1, e2, w1a, w1b, w2a, w2b)
    return out.reshape(b, c2, h, w_sp)


def _reference(emb1, emb2, w1, w2):
    """Direct JAX translation of the PyTorch forward (materializes the (n, n) matmuls)."""
    b, c, h, w = emb1.shape
    n = h * w
    e1r = emb1.reshape(b, c, 1, n)
    e2r = emb2.reshape(b, c, n, 1)
    sm2 = jax.nn.softmax(e2r, axis=2)
    sm1 = jax.nn.softmax(e1r, axis=-1)
    hi = jax.lax.Precision.HIGHEST
    inner = (jnp.matmul(sm2, e1r, precision=hi)
             + jnp.matmul(e2r, sm1, precision=hi))        # (b, c, n, n)
    row = jnp.mean(inner, axis=2).reshape(b, c, h, w)
    col = jnp.mean(inner, axis=3).reshape(b, c, h, w)
    i1 = emb1 * row + emb1
    i2 = emb2 * col + emb2
    rc = jnp.concatenate([i1, i2], axis=1)                # (b, 2c, h, w)
    y = jnp.mean(rc, axis=(2, 3))                         # (b, 2c)
    hid = jnp.maximum(jnp.dot(y, w1.T, precision=hi), 0.0)
    mask = jax.nn.sigmoid(jnp.dot(hid, w2.T, precision=hi))  # (b, 2c)
    return rc * mask[:, :, None, None] + rc


if __name__ == "__main__":
    key = jax.random.PRNGKey(0)
    k1, k2, k3, k4 = jax.random.split(key, 4)

    # Small but lane-dense shapes: n = h*w = 256 is a multiple of 128.
    b, c, h, w = 2, 32, 16, 16
    channel = 2 * c                  # fc operates on the concatenated channel dim
    r = channel // 16

    emb1 = jax.random.normal(k1, (b, c, h, w), jnp.float32)
    emb2 = jax.random.normal(k2, (b, c, h, w), jnp.float32)
    # deterministic synthetic fc weights (torch nn.Linear layout: (out, in), bias=False)
    w1 = jax.random.normal(k3, (r, channel), jnp.float32) * 0.1
    w2 = jax.random.normal(k4, (channel, r), jnp.float32) * 0.1

    # f32 path
    out = jax.block_until_ready(cross_fuse(emb1, emb2, w1, w2))
    ref = _reference(emb1, emb2, w1, w2)
    assert out.shape == ref.shape == (b, channel, h, w)
    assert jnp.allclose(out, ref, rtol=1e-3, atol=1e-3), "f32 mismatch vs reference"

    # bf16 I/O path (compute stays f32 inside the kernel; halves HBM traffic)
    e1_bf = emb1.astype(jnp.bfloat16)
    e2_bf = emb2.astype(jnp.bfloat16)
    out_bf = jax.block_until_ready(cross_fuse(e1_bf, e2_bf, w1, w2))
    assert out_bf.shape == (b, channel, h, w) and out_bf.dtype == jnp.bfloat16
    ref_bf = _reference(e1_bf.astype(jnp.float32), e2_bf.astype(jnp.float32), w1, w2)
    assert jnp.allclose(out_bf.astype(jnp.float32), ref_bf, rtol=3e-2, atol=3e-2), \
        "bf16 mismatch vs reference"

    print("KERNEL_OK")
</pallas_src>

<mosaic_0001>
module attributes {stable_mosaic.version = 11 : i64} {
  func.func @_cross_fuse_kernel(%arg0: i32, %arg1: memref<2x32x256xf32, #tpu.memory_space<vmem>>, %arg2: memref<2x32x256xf32, #tpu.memory_space<vmem>>, %arg3: memref<4x32xf32, #tpu.memory_space<vmem>>, %arg4: memref<4x32xf32, #tpu.memory_space<vmem>>, %arg5: memref<4x32xf32, #tpu.memory_space<vmem>>, %arg6: memref<4x32xf32, #tpu.memory_space<vmem>>, %arg7: memref<2x64x256xf32, #tpu.memory_space<vmem>>) attributes {dimension_semantics = [#tpu.dimension_semantics<parallel>], iteration_bounds = array<i64: 1>, scalar_prefetch = 0 : i64, scratch_operands = 0 : i64, tpu.core_type = #tpu.core_type<tc>, window_params = [{transform_indices = @transform_0, window_bounds = array<i64: 2, 32, 256>}, {transform_indices = @transform_1, window_bounds = array<i64: 2, 32, 256>}, {pipeline_mode = #tpu.pipeline_mode<synchronous>, transform_indices = @transform_2, window_bounds = array<i64: 4, 32>}, {pipeline_mode = #tpu.pipeline_mode<synchronous>, transform_indices = @transform_3, window_bounds = array<i64: 4, 32>}, {pipeline_mode = #tpu.pipeline_mode<synchronous>, transform_indices = @transform_4, window_bounds = array<i64: 4, 32>}, {pipeline_mode = #tpu.pipeline_mode<synchronous>, transform_indices = @transform_5, window_bounds = array<i64: 4, 32>}, {transform_indices = @transform_6, window_bounds = array<i64: 2, 64, 256>}]} {
    %c0 = arith.constant 0 : index
    %c0_0 = arith.constant 0 : index
    %c0_1 = arith.constant 0 : index
    %0 = vector.load %arg1[%c0, %c0_0, %c0_1] : memref<2x32x256xf32, #tpu.memory_space<vmem>>, vector<2x32x256xf32>
    %c0_2 = arith.constant 0 : index
    %c0_3 = arith.constant 0 : index
    %c0_4 = arith.constant 0 : index
    %1 = vector.load %arg2[%c0_2, %c0_3, %c0_4] : memref<2x32x256xf32, #tpu.memory_space<vmem>>, vector<2x32x256xf32>
    %cst = arith.constant dense<0xFF800000> : vector<2x32xf32>
    %2 = vector.multi_reduction <maximumf>, %0, %cst [2] : vector<2x32x256xf32> to vector<2x32xf32>
    %3 = vector.shape_cast %2 : vector<2x32xf32> to vector<2x32x1xf32>
    %4 = vector.broadcast %3 : vector<2x32x1xf32> to vector<2x32x256xf32>
    %5 = arith.subf %0, %4 : vector<2x32x256xf32>
    %6 = math.exp %5 : vector<2x32x256xf32>
    %cst_5 = arith.constant dense<0.000000e+00> : vector<2x32xf32>
    %7 = vector.multi_reduction <add>, %6, %cst_5 [2] : vector<2x32x256xf32> to vector<2x32xf32>
    %8 = vector.shape_cast %7 : vector<2x32xf32> to vector<2x32x1xf32>
    %9 = tpu.reciprocal %8 {approx = true} : vector<2x32x1xf32> -> vector<2x32x1xf32>
    %10 = vector.broadcast %9 : vector<2x32x1xf32> to vector<2x32x256xf32>
    %11 = arith.mulf %6, %10 : vector<2x32x256xf32>
    %cst_6 = arith.constant dense<0xFF800000> : vector<2x32xf32>
    %12 = vector.multi_reduction <maximumf>, %1, %cst_6 [2] : vector<2x32x256xf32> to vector<2x32xf32>
    %13 = vector.shape_cast %12 : vector<2x32xf32> to vector<2x32x1xf32>
    %14 = vector.broadcast %13 : vector<2x32x1xf32> to vector<2x32x256xf32>
    %15 = arith.subf %1, %14 : vector<2x32x256xf32>
    %16 = math.exp %15 : vector<2x32x256xf32>
    %cst_7 = arith.constant dense<0.000000e+00> : vector<2x32xf32>
    %17 = vector.multi_reduction <add>, %16, %cst_7 [2] : vector<2x32x256xf32> to vector<2x32xf32>
    %18 = vector.shape_cast %17 : vector<2x32xf32> to vector<2x32x1xf32>
    %19 = tpu.reciprocal %18 {approx = true} : vector<2x32x1xf32> -> vector<2x32x1xf32>
    %20 = vector.broadcast %19 : vector<2x32x1xf32> to vector<2x32x256xf32>
    %21 = arith.mulf %16, %20 : vector<2x32x256xf32>
    %cst_8 = arith.constant dense<0.000000e+00> : vector<2x32xf32>
    %22 = vector.multi_reduction <add>, %0, %cst_8 [2] : vector<2x32x256xf32> to vector<2x32xf32>
    %23 = vector.shape_cast %22 : vector<2x32xf32> to vector<2x32x1xf32>
    %cst_9 = arith.constant 2.560000e+02 : f32
    %24 = vector.broadcast %cst_9 : f32 to vector<2x32x1xf32>
    %25 = arith.divf %23, %24 : vector<2x32x1xf32>
    %cst_10 = arith.constant dense<0.000000e+00> : vector<2x32xf32>
    %26 = vector.multi_reduction <add>, %1, %cst_10 [2] : vector<2x32x256xf32> to vector<2x32xf32>
    %27 = vector.shape_cast %26 : vector<2x32xf32> to vector<2x32x1xf32>
    %cst_11 = arith.constant 2.560000e+02 : f32
    %28 = vector.broadcast %cst_11 : f32 to vector<2x32x1xf32>
    %29 = arith.divf %27, %28 : vector<2x32x1xf32>
    %cst_12 = arith.constant 3.906250e-03 : f32
    %30 = vector.broadcast %cst_12 : f32 to vector<2x32x256xf32>
    %31 = arith.mulf %0, %30 : vector<2x32x256xf32>
    %32 = vector.broadcast %29 : vector<2x32x1xf32> to vector<2x32x256xf32>
    %33 = arith.mulf %32, %11 : vector<2x32x256xf32>
    %34 = arith.addf %31, %33 : vector<2x32x256xf32>
    %35 = vector.broadcast %25 : vector<2x32x1xf32> to vector<2x32x256xf32>
    %36 = arith.mulf %21, %35 : vector<2x32x256xf32>
    %cst_13 = arith.constant 3.906250e-03 : f32
    %37 = vector.broadcast %cst_13 : f32 to vector<2x32x256xf32>
    %38 = arith.mulf %1, %37 : vector<2x32x256xf32>
    %39 = arith.addf %36, %38 : vector<2x32x256xf32>
    %40 = arith.mulf %0, %34 : vector<2x32x256xf32>
    %41 = arith.addf %40, %0 : vector<2x32x256xf32>
    %42 = arith.mulf %1, %39 : vector<2x32x256xf32>
    %43 = arith.addf %42, %1 : vector<2x32x256xf32>
    %cst_14 = arith.constant dense<0.000000e+00> : vector<2x32xf32>
    %44 = vector.multi_reduction <add>, %41, %cst_14 [2] : vector<2x32x256xf32> to vector<2x32xf32>
    %cst_15 = arith.constant 2.560000e+02 : f32
    %45 = vector.broadcast %cst_15 : f32 to vector<2x32xf32>
    %46 = arith.divf %44, %45 : vector<2x32xf32>
    %cst_16 = arith.constant dense<0.000000e+00> : vector<2x32xf32>
    %47 = vector.multi_reduction <add>, %43, %cst_16 [2] : vector<2x32x256xf32> to vector<2x32xf32>
    %cst_17 = arith.constant 2.560000e+02 : f32
    %48 = vector.broadcast %cst_17 : f32 to vector<2x32xf32>
    %49 = arith.divf %47, %48 : vector<2x32xf32>
    %c0_18 = arith.constant 0 : index
    %c0_19 = arith.constant 0 : index
    %50 = vector.load %arg3[%c0_18, %c0_19] : memref<4x32xf32, #tpu.memory_space<vmem>>, vector<4x32xf32>
    %cst_20 = arith.constant dense<0.000000e+00> : vector<2x4xf32>
    %51 = tpu.matmul %46, %50, %cst_20 {dimension_numbers = #tpu.dot_dimension_numbers<[1], [1], [0], [0], [0, 0, 1, 0], [], []>} : vector<2x32xf32>, vector<4x32xf32>, vector<2x4xf32> -> vector<2x4xf32>
    %c0_21 = arith.constant 0 : index
    %c0_22 = arith.constant 0 : index
    %52 = vector.load %arg4[%c0_21, %c0_22] : memref<4x32xf32, #tpu.memory_space<vmem>>, vector<4x32xf32>
    %cst_23 = arith.constant dense<0.000000e+00> : vector<2x4xf32>
    %53 = tpu.matmul %49, %52, %cst_23 {dimension_numbers = #tpu.dot_dimension_numbers<[1], [1], [0], [0], [0, 0, 1, 0], [], []>} : vector<2x32xf32>, vector<4x32xf32>, vector<2x4xf32> -> vector<2x4xf32>
    %54 = arith.addf %51, %53 : vector<2x4xf32>
    %cst_24 = arith.constant 0.000000e+00 : f32
    %55 = vector.broadcast %cst_24 : f32 to vector<2x4xf32>
    %56 = arith.maximumf %54, %55 : vector<2x4xf32>
    %c0_25 = arith.constant 0 : index
    %c0_26 = arith.constant 0 : index
    %57 = vector.load %arg5[%c0_25, %c0_26] : memref<4x32xf32, #tpu.memory_space<vmem>>, vector<4x32xf32>
    %cst_27 = arith.constant dense<0.000000e+00> : vector<2x32xf32>
    %58 = tpu.matmul %56, %57, %cst_27 {dimension_numbers = #tpu.dot_dimension_numbers<[1], [0], [0], [1], [0, 0, 1, 1], [], []>} : vector<2x4xf32>, vector<4x32xf32>, vector<2x32xf32> -> vector<2x32xf32>
    %59 = math.absf %58 : vector<2x32xf32>
    %cst_28 = arith.constant 0.000000e+00 : f32
    %60 = vector.broadcast %cst_28 : f32 to vector<2x32xf32>
    %61 = arith.subf %60, %59 : vector<2x32xf32>
    %62 = math.exp %61 : vector<2x32xf32>
    %cst_29 = arith.constant 0.000000e+00 : f32
    %63 = vector.broadcast %cst_29 : f32 to vector<2x32xf32>
    %64 = arith.cmpf oge, %58, %63 : vector<2x32xf32>
    %cst_30 = arith.constant 1.000000e+00 : f32
    %65 = vector.broadcast %cst_30 : f32 to vector<2x32xf32>
    %66 = arith.select %64, %65, %62 : vector<2x32xi1>, vector<2x32xf32>
    %cst_31 = arith.constant 1.000000e+00 : f32
    %67 = vector.broadcast %cst_31 : f32 to vector<2x32xf32>
    %68 = arith.addf %67, %62 : vector<2x32xf32>
    %69 = arith.divf %66, %68 : vector<2x32xf32>
    %c0_32 = arith.constant 0 : index
    %c0_33 = arith.constant 0 : index
    %70 = vector.load %arg6[%c0_32, %c0_33] : memref<4x32xf32, #tpu.memory_space<vmem>>, vector<4x32xf32>
    %cst_34 = arith.constant dense<0.000000e+00> : vector<2x32xf32>
    %71 = tpu.matmul %56, %70, %cst_34 {dimension_numbers = #tpu.dot_dimension_numbers<[1], [0], [0], [1], [0, 0, 1, 1], [], []>} : vector<2x4xf32>, vector<4x32xf32>, vector<2x32xf32> -> vector<2x32xf32>
    %72 = math.absf %71 : vector<2x32xf32>
    %cst_35 = arith.constant 0.000000e+00 : f32
    %73 = vector.broadcast %cst_35 : f32 to vector<2x32xf32>
    %74 = arith.subf %73, %72 : vector<2x32xf32>
    %75 = math.exp %74 : vector<2x32xf32>
    %cst_36 = arith.constant 0.000000e+00 : f32
    %76 = vector.broadcast %cst_36 : f32 to vector<2x32xf32>
    %77 = arith.cmpf oge, %71, %76 : vector<2x32xf32>
    %cst_37 = arith.constant 1.000000e+00 : f32
    %78 = vector.broadcast %cst_37 : f32 to vector<2x32xf32>
    %79 = arith.select %77, %78, %75 : vector<2x32xi1>, vector<2x32xf32>
    %cst_38 = arith.constant 1.000000e+00 : f32
    %80 = vector.broadcast %cst_38 : f32 to vector<2x32xf32>
    %81 = arith.addf %80, %75 : vector<2x32xf32>
    %82 = arith.divf %79, %81 : vector<2x32xf32>
    %83 = vector.shape_cast %69 : vector<2x32xf32> to vector<2x32x1xf32>
    %cst_39 = arith.constant 1.000000e+00 : f32
    %84 = vector.broadcast %cst_39 : f32 to vector<2x32x1xf32>
    %85 = arith.addf %83, %84 : vector<2x32x1xf32>
    %86 = vector.broadcast %85 : vector<2x32x1xf32> to vector<2x32x256xf32>
    %87 = arith.mulf %41, %86 : vector<2x32x256xf32>
    %c0_40 = arith.constant 0 : index
    %c0_41 = arith.constant 0 : index
    %c0_42 = arith.constant 0 : index
    %88 = vector.load %arg7[%c0_40, %c0_41, %c0_42] : memref<2x64x256xf32, #tpu.memory_space<vmem>>, vector<2x32x256xf32>
    tpu.vector_store %arg7[%c0_40, %c0_41, %c0_42], %87 {strides = array<i32>} : memref<2x64x256xf32, #tpu.memory_space<vmem>>, vector<2x32x256xf32>,
    %89 = vector.shape_cast %82 : vector<2x32xf32> to vector<2x32x1xf32>
    %cst_43 = arith.constant 1.000000e+00 : f32
    %90 = vector.broadcast %cst_43 : f32 to vector<2x32x1xf32>
    %91 = arith.addf %89, %90 : vector<2x32x1xf32>
    %92 = vector.broadcast %91 : vector<2x32x1xf32> to vector<2x32x256xf32>
    %93 = arith.mulf %43, %92 : vector<2x32x256xf32>
    %c0_44 = arith.constant 0 : index
    %c32 = arith.constant 32 : index
    %c0_45 = arith.constant 0 : index
    %94 = vector.load %arg7[%c0_44, %c32, %c0_45] : memref<2x64x256xf32, #tpu.memory_space<vmem>>, vector<2x32x256xf32>
    tpu.vector_store %arg7[%c0_44, %c32, %c0_45], %93 {strides = array<i32>} : memref<2x64x256xf32, #tpu.memory_space<vmem>>, vector<2x32x256xf32>,
    return
  }
  func.func @transform_0(%arg0: i32) -> (i32, i32, i32) {
    %c0_i32 = arith.constant 0 : i32
    %c0_i32_0 = arith.constant 0 : i32
    %c0_i32_1 = arith.constant 0 : i32
    return %arg0, %c0_i32, %c0_i32_0 : i32, i32, i32
  }
  func.func @transform_1(%arg0: i32) -> (i32, i32, i32) {
    %c0_i32 = arith.constant 0 : i32
    %c0_i32_0 = arith.constant 0 : i32
    %c0_i32_1 = arith.constant 0 : i32
    return %arg0, %c0_i32, %c0_i32_0 : i32, i32, i32
  }
  func.func @transform_2(%arg0: i32) -> (i32, i32) {
    %c0_i32 = arith.constant 0 : i32
    %c0_i32_0 = arith.constant 0 : i32
    %c0_i32_1 = arith.constant 0 : i32
    return %c0_i32, %c0_i32_0 : i32, i32
  }
  func.func @transform_3(%arg0: i32) -> (i32, i32) {
    %c0_i32 = arith.constant 0 : i32
    %c0_i32_0 = arith.constant 0 : i32
    %c0_i32_1 = arith.constant 0 : i32
    return %c0_i32, %c0_i32_0 : i32, i32
  }
  func.func @transform_4(%arg0: i32) -> (i32, i32) {
    %c0_i32 = arith.constant 0 : i32
    %c0_i32_0 = arith.constant 0 : i32
    %c0_i32_1 = arith.constant 0 : i32
    return %c0_i32, %c0_i32_0 : i32, i32
  }
  func.func @transform_5(%arg0: i32) -> (i32, i32) {
    %c0_i32 = arith.constant 0 : i32
    %c0_i32_0 = arith.constant 0 : i32
    %c0_i32_1 = arith.constant 0 : i32
    return %c0_i32, %c0_i32_0 : i32, i32
  }
  func.func @transform_6(%arg0: i32) -> (i32, i32, i32) {
    %c0_i32 = arith.constant 0 : i32
    %c0_i32_0 = arith.constant 0 : i32
    %c0_i32_1 = arith.constant 0 : i32
    return %arg0, %c0_i32, %c0_i32_0 : i32, i32, i32
  }
}

</mosaic_0001>

<llo_original>
// kernel: tpu_custom_call.1
$region0: #{tpu_custom_call.1}
  #allocation0 [shape = 'u32[]', space=smem, size = 0x4, offset = 0x4, fixed_abs, tag = 'smem constant byte address 0x4 - core index']
  #allocation1 [shape = 'u32[144,128]{1,0:T(1,128)}', space=vmem, size = 0x12000, scoped, tag = 'internal scratch']
  %s0 = inlined_call_operand.hbm [shape: f32[2,32,256], index: 0, kind: input, shape index: {}]
  %s1 = inlined_call_operand.hbm [shape: f32[2,32,256], index: 1, kind: input, shape index: {}]
  %s2 = inlined_call_operand.hbm [shape: f32[4,32], index: 2, kind: input, shape index: {}]
  %s3 = inlined_call_operand.vmem [shape: f32[4,32], index: 3, kind: input, shape index: {}]
  %s4 = inlined_call_operand.hbm [shape: f32[4,32], index: 4, kind: input, shape index: {}]
  %s5 = inlined_call_operand.vmem [shape: f32[4,32], index: 5, kind: input, shape index: {}]
  %s6 = inlined_call_operand.hbm [shape: f32[2,64,256], index: 6, kind: output, shape index: {}]
  %s7 = sld [smem:[#allocation0]]
  $region50: #{tpu_custom_call.1} parent=0
    _
  %s9 = ssub.s32 1, %s7
  %s10 = scalar_select 0, %s9, %s7
  $region1: #{tpu_custom_call.1} parent=0
    #allocation2 [shape = 'u8[65536]{0}', space=vmem, size = 0x10000, scoped, tag = 'input window, operand 0, single buffered']
    #allocation3 [shape = 's32[1]{0}', space=sflag, size = 0x4, scoped, tag = 'scoped memory for tpu_custom_call.1']
    #allocation4 [shape = 's32[1]{0}', space=sflag, size = 0x4, scoped, tag = 'scoped memory for tpu_custom_call.1']
    #allocation5 [shape = 'u8[65536]{0}', space=vmem, size = 0x10000, scoped, tag = 'input window, operand 1, single buffered']
    #allocation6 [shape = 's32[1]{0}', space=sflag, size = 0x4, scoped, tag = 'scoped memory for tpu_custom_call.1']
    #allocation7 [shape = 'u8[2048]{0}', space=vmem, size = 0x800, scoped, tag = 'input window, operand 2, single buffered']
    #allocation8 [shape = 'u8[2048]{0}', space=vmem, size = 0x800, scoped, tag = 'input window, operand 4, single buffered']
    #allocation9 [shape = 's32[1]{0}', space=sflag, size = 0x4, scoped, tag = 'scoped memory for tpu_custom_call.1']
    #allocation10 [shape = 'u8[131072]{0}', space=vmem, size = 0x20000, scoped, tag = 'output window, operand 0, single buffered']
    %11 = vsyncpa [#allocation3], 0
    %12 = vsyncpa [#allocation6], 0
    %13 = vsyncpa [#allocation9], 0
    %14 = vsyncpa [#allocation4], 0
    // Predicated region
    $region2: #{tpu_custom_call.1} parent=1 // pred_check
      _
    $region3: #{tpu_custom_call.1} parent=1 // pred_check_branch
      %16 = sbr.rel (0) target = $region5
    $region4: #{tpu_custom_call.1} parent=1 // pred_region
      %s18 = ssub.s32 2048, 2048
      %19 = vsyncadd [#allocation3], %s18
      %s20 = sshll.u32 [#allocation2], 4
      %s21 = int_to_ptr.vmem [resolvable:$true] %s20
      %26 = dma.hbm_to_vmem [thread:$0]  %s0, 2048, %s21, [#allocation3], 256, 256, 16
    $region5: #{tpu_custom_call.1} parent=1 // pred_fallthru
      _
    // Predicated region
    $region6: #{tpu_custom_call.1} parent=1 // pred_check
      _
    $region7: #{tpu_custom_call.1} parent=1 // pred_check_branch
      %28 = sbr.rel (0) target = $region9
    $region8: #{tpu_custom_call.1} parent=1 // pred_region
      %s30 = ssub.s32 2048, 2048
      %31 = vsyncadd [#allocation6], %s30
      %s32 = sshll.u32 [#allocation5], 4
      %s33 = int_to_ptr.vmem [resolvable:$true] %s32
      %38 = dma.hbm_to_vmem [thread:$0]  %s1, 2048, %s33, [#allocation6], 256, 256, 16
    $region9: #{tpu_custom_call.1} parent=1 // pred_fallthru
      _
    // Predicated region
    $region10: #{tpu_custom_call.1} parent=1 // pred_check
      _
    $region11: #{tpu_custom_call.1} parent=1 // pred_check_branch
      %40 = sbr.rel (0) target = $region13
    $region12: #{tpu_custom_call.1} parent=1 // pred_region
      %s42 = ssub.s32 64, 64
      %43 = vsyncadd [#allocation6], %s42
      %s45 = sshll.u32 [#allocation7], 4
      %s46 = int_to_ptr.vmem [resolvable:$true] %s45
      %48 = dma.hbm_to_vmem [thread:$0]  %s2, 64, %s46, [#allocation6]
    $region13: #{tpu_custom_call.1} parent=1 // pred_fallthru
      _
    // Predicated region
    $region14: #{tpu_custom_call.1} parent=1 // pred_check
      _
    $region15: #{tpu_custom_call.1} parent=1 // pred_check_branch
      %50 = sbr.rel (0) target = $region17
    $region16: #{tpu_custom_call.1} parent=1 // pred_region
      _
    $region17: #{tpu_custom_call.1} parent=1 // pred_fallthru
      _
    // Predicated region
    $region18: #{tpu_custom_call.1} parent=1 // pred_check
      _
    $region19: #{tpu_custom_call.1} parent=1 // pred_check_branch
      %52 = sbr.rel (0) target = $region21
    $region20: #{tpu_custom_call.1} parent=1 // pred_region
      %s54 = ssub.s32 64, 64
      %55 = vsyncadd [#allocation9], %s54
      %s57 = sshll.u32 [#allocation8], 4
      %s58 = int_to_ptr.vmem [resolvable:$true] %s57
      %60 = dma.hbm_to_vmem [thread:$0]  %s4, 64, %s58, [#allocation9]
    $region21: #{tpu_custom_call.1} parent=1 // pred_fallthru
      _
    // Predicated region
    $region22: #{tpu_custom_call.1} parent=1 // pred_check
      _
    $region23: #{tpu_custom_call.1} parent=1 // pred_check_branch
      %62 = sbr.rel (0) target = $region25
    $region24: #{tpu_custom_call.1} parent=1 // pred_region
      _
    $region25: #{tpu_custom_call.1} parent=1 // pred_fallthru
      _
    // Predicated region
    $region26: #{tpu_custom_call.1} parent=1 // pred_check
      _
    $region27: #{tpu_custom_call.1} parent=1 // pred_check_branch
      %64 = sbr.rel (0) target = $region29
    $region28: #{tpu_custom_call.1} parent=1 // pred_region
      %65 = dma.done [#allocation3], 2048
    $region29: #{tpu_custom_call.1} parent=1 // pred_fallthru
      _
    // Predicated region
    $region30: #{tpu_custom_call.1} parent=1 // pred_check
      _
    $region31: #{tpu_custom_call.1} parent=1 // pred_check_branch
      %67 = sbr.rel (0) target = $region33
    $region32: #{tpu_custom_call.1} parent=1 // pred_region
      %68 = dma.done [#allocation6], 2048
    $region33: #{tpu_custom_call.1} parent=1 // pred_fallthru
      _
    // Predicated region
    $region34: #{tpu_custom_call.1} parent=1 // pred_check
      _
    $region35: #{tpu_custom_call.1} parent=1 // pred_check_branch
      %70 = sbr.rel (0) target = $region37
    $region36: #{tpu_custom_call.1} parent=1 // pred_region
      %71 = dma.done [#allocation6], 64
    $region37: #{tpu_custom_call.1} parent=1 // pred_fallthru
      _
    // Predicated region
    $region38: #{tpu_custom_call.1} parent=1 // pred_check
      _
    $region39: #{tpu_custom_call.1} parent=1 // pred_check_branch
      %73 = sbr.rel (0) target = $region41
    $region40: #{tpu_custom_call.1} parent=1 // pred_region
      %74 = dma.done [#allocation9], 64
    $region41: #{tpu_custom_call.1} parent=1 // pred_fallthru
      _
    %v75 = vld [vmem:[#allocation2] sm:$0xff]
    %v76 = vld [vmem:[#allocation2 + $0x8] sm:$0xff]
    %v77 = vld [vmem:[#allocation2 + $0x10] sm:$0xff]
    %v78 = vld [vmem:[#allocation2 + $0x18] sm:$0xff]
    %v79 = vld [vmem:[#allocation2 + $0x20] sm:$0xff]
    %v80 = vld [vmem:[#allocation2 + $0x28] sm:$0xff]
    %v81 = vld [vmem:[#allocation2 + $0x30] sm:$0xff]
    %v82 = vld [vmem:[#allocation2 + $0x38] sm:$0xff]
    %v83 = vld [vmem:[#allocation2 + $0x40] sm:$0xff]
    %v84 = vld [vmem:[#allocation2 + $0x48] sm:$0xff]
    %v85 = vld [vmem:[#allocation2 + $0x50] sm:$0xff]
    %v86 = vld [vmem:[#allocation2 + $0x58] sm:$0xff]
    %v87 = vld [vmem:[#allocation2 + $0x60] sm:$0xff]
    %v88 = vld [vmem:[#allocation2 + $0x68] sm:$0xff]
    %v89 = vld [vmem:[#allocation2 + $0x70] sm:$0xff]
    %v90 = vld [vmem:[#allocation2 + $0x78] sm:$0xff]
    %v91 = vld [vmem:[#allocation5] sm:$0xff]
    %v92 = vld [vmem:[#allocation5 + $0x8] sm:$0xff]
    %v93 = vld [vmem:[#allocation5 + $0x10] sm:$0xff]
    %v94 = vld [vmem:[#allocation5 + $0x18] sm:$0xff]
    %v95 = vld [vmem:[#allocation5 + $0x20] sm:$0xff]
    %v96 = vld [vmem:[#allocation5 + $0x28] sm:$0xff]
    %v97 = vld [vmem:[#allocation5 + $0x30] sm:$0xff]
    %v98 = vld [vmem:[#allocation5 + $0x38] sm:$0xff]
    %v99 = vld [vmem:[#allocation5 + $0x40] sm:$0xff]
    %v100 = vld [vmem:[#allocation5 + $0x48] sm:$0xff]
    %v101 = vld [vmem:[#allocation5 + $0x50] sm:$0xff]
    %v102 = vld [vmem:[#allocation5 + $0x58] sm:$0xff]
    %v103 = vld [vmem:[#allocation5 + $0x60] sm:$0xff]
    %v104 = vld [vmem:[#allocation5 + $0x68] sm:$0xff]
    %v105 = vld [vmem:[#allocation5 + $0x70] sm:$0xff]
    %v106 = vld [vmem:[#allocation5 + $0x78] sm:$0xff]
    %v107 = vmax.f32 %v75, %v76
    %108 = vmax.xlane.f32.xlu0 %v107
    %v109 = vpop.xlane.xlu0 %108
    %v110 = vmax.f32 %v77, %v78
    %111 = vmax.xlane.f32.xlu0 %v110
    %v112 = vpop.xlane.xlu0 %111
    %v113 = vmax.f32 %v79, %v80
    %114 = vmax.xlane.f32.xlu0 %v113
    %v115 = vpop.xlane.xlu0 %114
    %v116 = vmax.f32 %v81, %v82
    %117 = vmax.xlane.f32.xlu0 %v116
    %v118 = vpop.xlane.xlu0 %117
    %v119 = vmax.f32 %v83, %v84
    %120 = vmax.xlane.f32.xlu0 %v119
    %v121 = vpop.xlane.xlu0 %120
    %v122 = vmax.f32 %v85, %v86
    %123 = vmax.xlane.f32.xlu0 %v122
    %v124 = vpop.xlane.xlu0 %123
    %v125 = vmax.f32 %v87, %v88
    %126 = vmax.xlane.f32.xlu0 %v125
    %v127 = vpop.xlane.xlu0 %126
    %v128 = vmax.f32 %v89, %v90
    %129 = vmax.xlane.f32.xlu0 %v128
    %v130 = vpop.xlane.xlu0 %129
    %v131 = vsub.f32 %v75, %v109
    %v132 = vsub.f32 %v76, %v109
    %v133 = vsub.f32 %v77, %v112
    %v134 = vsub.f32 %v78, %v112
    %v135 = vsub.f32 %v79, %v115
    %v136 = vsub.f32 %v80, %v115
    %v137 = vsub.f32 %v81, %v118
    %v138 = vsub.f32 %v82, %v118
    %v139 = vsub.f32 %v83, %v121
    %v140 = vsub.f32 %v84, %v121
    %v141 = vsub.f32 %v85, %v124
    %v142 = vsub.f32 %v86, %v124
    %v143 = vsub.f32 %v87, %v127
    %v144 = vsub.f32 %v88, %v127
    %v145 = vsub.f32 %v89, %v130
    %v146 = vsub.f32 %v90, %v130
    %v147 = vmul.f32 %v131, 1.442695
    %v148 = vpow.pop %v147
    %v149 = vmul.f32 %v132, 1.442695
    %v150 = vpow.pop %v149
    %v151 = vmul.f32 %v133, 1.442695
    %v152 = vpow.pop %v151
    %v153 = vmul.f32 %v134, 1.442695
    %v154 = vpow.pop %v153
    %v155 = vmul.f32 %v135, 1.442695
    %v156 = vpow.pop %v155
    %v157 = vmul.f32 %v136, 1.442695
    %v158 = vpow.pop %v157
    %v159 = vmul.f32 %v137, 1.442695
    %v160 = vpow.pop %v159
    %v161 = vmul.f32 %v138, 1.442695
    %v162 = vpow.pop %v161
    %v163 = vmul.f32 %v139, 1.442695
    %v164 = vpow.pop %v163
    %v165 = vmul.f32 %v140, 1.442695
    %v166 = vpow.pop %v165
    %v167 = vmul.f32 %v141, 1.442695
    %v168 = vpow.pop %v167
    %v169 = vmul.f32 %v142, 1.442695
    %v170 = vpow.pop %v169
    %v171 = vmul.f32 %v143, 1.442695
    %v172 = vpow.pop %v171
    %v173 = vmul.f32 %v144, 1.442695
    %v174 = vpow.pop %v173
    %v175 = vmul.f32 %v145, 1.442695
    %v176 = vpow.pop %v175
    %v177 = vmul.f32 %v146, 1.442695
    %v178 = vpow.pop %v177
    %v179 = vadd.f32 %v148, %v150
    %180 = vadd.xlane.f32.xlu0 %v179
    %v181 = vpop.xlane.xlu0 %180
    %v182 = vadd.f32 %v152, %v154
    %183 = vadd.xlane.f32.xlu0 %v182
    %v184 = vpop.xlane.xlu0 %183
    %v185 = vadd.f32 %v156, %v158
    %186 = vadd.xlane.f32.xlu0 %v185
    %v187 = vpop.xlane.xlu0 %186
    %v188 = vadd.f32 %v160, %v162
    %189 = vadd.xlane.f32.xlu0 %v188
    %v190 = vpop.xlane.xlu0 %189
    %v191 = vadd.f32 %v164, %v166
    %192 = vadd.xlane.f32.xlu0 %v191
    %v193 = vpop.xlane.xlu0 %192
    %v194 = vadd.f32 %v168, %v170
    %195 = vadd.xlane.f32.xlu0 %v194
    %v196 = vpop.xlane.xlu0 %195
    %v197 = vadd.f32 %v172, %v174
    %198 = vadd.xlane.f32.xlu0 %v197
    %v199 = vpop.xlane.xlu0 %198
    %v200 = vadd.f32 %v176, %v178
    %201 = vadd.xlane.f32.xlu0 %v200
    %v202 = vpop.xlane.xlu0 %201
    %v203 = vrcp.pop %v181
    %v204 = vrcp.pop %v184
    %v205 = vrcp.pop %v187
    %v206 = vrcp.pop %v190
    %v207 = vrcp.pop %v193
    %v208 = vrcp.pop %v196
    %v209 = vrcp.pop %v199
    %v210 = vrcp.pop %v202
    %v211 = vmul.f32 %v148, %v203
    %v212 = vmul.f32 %v150, %v203
    %v213 = vmul.f32 %v152, %v204
    %v214 = vmul.f32 %v154, %v204
    %v215 = vmul.f32 %v156, %v205
    %v216 = vmul.f32 %v158, %v205
    %v217 = vmul.f32 %v160, %v206
    %v218 = vmul.f32 %v162, %v206
    %v219 = vmul.f32 %v164, %v207
    %v220 = vmul.f32 %v166, %v207
    %v221 = vmul.f32 %v168, %v208
    %v222 = vmul.f32 %v170, %v208
    %v223 = vmul.f32 %v172, %v209
    %v224 = vmul.f32 %v174, %v209
    %v225 = vmul.f32 %v176, %v210
    %v226 = vmul.f32 %v178, %v210
    %v227 = vmax.f32 %v91, %v92
    %228 = vmax.xlane.f32.xlu0 %v227
    %v229 = vpop.xlane.xlu0 %228
    %v230 = vmax.f32 %v93, %v94
    %231 = vmax.xlane.f32.xlu0 %v230
    %v232 = vpop.xlane.xlu0 %231
    %v233 = vmax.f32 %v95, %v96
    %234 = vmax.xlane.f32.xlu0 %v233
    %v235 = vpop.xlane.xlu0 %234
    %v236 = vmax.f32 %v97, %v98
    %237 = vmax.xlane.f32.xlu0 %v236
    %v238 = vpop.xlane.xlu0 %237
    %v239 = vmax.f32 %v99, %v100
    %240 = vmax.xlane.f32.xlu0 %v239
    %v241 = vpop.xlane.xlu0 %240
    %v242 = vmax.f32 %v101, %v102
    %243 = vmax.xlane.f32.xlu0 %v242
    %v244 = vpop.xlane.xlu0 %243
    %v245 = vmax.f32 %v103, %v104
    %246 = vmax.xlane.f32.xlu0 %v245
    %v247 = vpop.xlane.xlu0 %246
    %v248 = vmax.f32 %v105, %v106
    %249 = vmax.xlane.f32.xlu0 %v248
    %v250 = vpop.xlane.xlu0 %249
    %v251 = vsub.f32 %v91, %v229
    %v252 = vsub.f32 %v92, %v229
    %v253 = vsub.f32 %v93, %v232
    %v254 = vsub.f32 %v94, %v232
    %v255 = vsub.f32 %v95, %v235
    %v256 = vsub.f32 %v96, %v235
    %v257 = vsub.f32 %v97, %v238
    %v258 = vsub.f32 %v98, %v238
    %v259 = vsub.f32 %v99, %v241
    %v260 = vsub.f32 %v100, %v241
    %v261 = vsub.f32 %v101, %v244
    %v262 = vsub.f32 %v102, %v244
    %v263 = vsub.f32 %v103, %v247
    %v264 = vsub.f32 %v104, %v247
    %v265 = vsub.f32 %v105, %v250
    %v266 = vsub.f32 %v106, %v250
    %v267 = vmul.f32 %v251, 1.442695
    %v268 = vpow.pop %v267
    %v269 = vmul.f32 %v252, 1.442695
    %v270 = vpow.pop %v269
    %v271 = vmul.f32 %v253, 1.442695
    %v272 = vpow.pop %v271
    %v273 = vmul.f32 %v254, 1.442695
    %v274 = vpow.pop %v273
    %v275 = vmul.f32 %v255, 1.442695
    %v276 = vpow.pop %v275
    %v277 = vmul.f32 %v256, 1.442695
    %v278 = vpow.pop %v277
    %v279 = vmul.f32 %v257, 1.442695
    %v280 = vpow.pop %v279
    %v281 = vmul.f32 %v258, 1.442695
    %v282 = vpow.pop %v281
    %v283 = vmul.f32 %v259, 1.442695
    %v284 = vpow.pop %v283
    %v285 = vmul.f32 %v260, 1.442695
    %v286 = vpow.pop %v285
    %v287 = vmul.f32 %v261, 1.442695
    %v288 = vpow.pop %v287
    %v289 = vmul.f32 %v262, 1.442695
    %v290 = vpow.pop %v289
    %v291 = vmul.f32 %v263, 1.442695
    %v292 = vpow.pop %v291
    %v293 = vmul.f32 %v264, 1.442695
    %v294 = vpow.pop %v293
    %v295 = vmul.f32 %v265, 1.442695
    %v296 = vpow.pop %v295
    %v297 = vmul.f32 %v266, 1.442695
    %v298 = vpow.pop %v297
    %v299 = vadd.f32 %v268, %v270
    %300 = vadd.xlane.f32.xlu0 %v299
    %v301 = vpop.xlane.xlu0 %300
    %v302 = vadd.f32 %v272, %v274
    %303 = vadd.xlane.f32.xlu0 %v302
    %v304 = vpop.xlane.xlu0 %303
    %v305 = vadd.f32 %v276, %v278
    %306 = vadd.xlane.f32.xlu0 %v305
    %v307 = vpop.xlane.xlu0 %306
    %v308 = vadd.f32 %v280, %v282
    %309 = vadd.xlane.f32.xlu0 %v308
    %v310 = vpop.xlane.xlu0 %309
    %v311 = vadd.f32 %v284, %v286
    %312 = vadd.xlane.f32.xlu0 %v311
    %v313 = vpop.xlane.xlu0 %312
    %v314 = vadd.f32 %v288, %v290
    %315 = vadd.xlane.f32.xlu0 %v314
    %v316 = vpop.xlane.xlu0 %315
    %v317 = vadd.f32 %v292, %v294
    %318 = vadd.xlane.f32.xlu0 %v317
    %v319 = vpop.xlane.xlu0 %318
    %v320 = vadd.f32 %v296, %v298
    %321 = vadd.xlane.f32.xlu0 %v320
    %v322 = vpop.xlane.xlu0 %321
    %v323 = vrcp.pop %v301
    %v324 = vrcp.pop %v304
    %v325 = vrcp.pop %v307
    %v326 = vrcp.pop %v310
    %v327 = vrcp.pop %v313
    %v328 = vrcp.pop %v316
    %v329 = vrcp.pop %v319
    %v330 = vrcp.pop %v322
    %v331 = vmul.f32 %v268, %v323
    %v332 = vmul.f32 %v270, %v323
    %v333 = vmul.f32 %v272, %v324
    %v334 = vmul.f32 %v274, %v324
    %v335 = vmul.f32 %v276, %v325
    %v336 = vmul.f32 %v278, %v325
    %v337 = vmul.f32 %v280, %v326
    %v338 = vmul.f32 %v282, %v326
    %v339 = vmul.f32 %v284, %v327
    %v340 = vmul.f32 %v286, %v327
    %v341 = vmul.f32 %v288, %v328
    %v342 = vmul.f32 %v290, %v328
    %v343 = vmul.f32 %v292, %v329
    %v344 = vmul.f32 %v294, %v329
    %v345 = vmul.f32 %v296, %v330
    %v346 = vmul.f32 %v298, %v330
    %v347 = vadd.f32 %v75, %v76
    %348 = vadd.xlane.f32.xlu0 %v347
    %v349 = vpop.xlane.xlu0 %348
    %v350 = vadd.f32 %v77, %v78
    %351 = vadd.xlane.f32.xlu0 %v350
    %v352 = vpop.xlane.xlu0 %351
    %v353 = vadd.f32 %v79, %v80
    %354 = vadd.xlane.f32.xlu0 %v353
    %v355 = vpop.xlane.xlu0 %354
    %v356 = vadd.f32 %v81, %v82
    %357 = vadd.xlane.f32.xlu0 %v356
    %v358 = vpop.xlane.xlu0 %357
    %v359 = vadd.f32 %v83, %v84
    %360 = vadd.xlane.f32.xlu0 %v359
    %v361 = vpop.xlane.xlu0 %360
    %v362 = vadd.f32 %v85, %v86
    %363 = vadd.xlane.f32.xlu0 %v362
    %v364 = vpop.xlane.xlu0 %363
    %v365 = vadd.f32 %v87, %v88
    %366 = vadd.xlane.f32.xlu0 %v365
    %v367 = vpop.xlane.xlu0 %366
    %v368 = vadd.f32 %v89, %v90
    %369 = vadd.xlane.f32.xlu0 %v368
    %v370 = vpop.xlane.xlu0 %369
    %v371 = vrcp.pop 256.0
    %v372 = vmul.f32 %v349, %v371
    %v373 = vmul.f32 %v352, %v371
    %v374 = vmul.f32 %v355, %v371
    %v375 = vmul.f32 %v358, %v371
    %v376 = vmul.f32 %v361, %v371
    %v377 = vmul.f32 %v364, %v371
    %v378 = vmul.f32 %v367, %v371
    %v379 = vmul.f32 %v370, %v371
    %v380 = vadd.f32 %v91, %v92
    %381 = vadd.xlane.f32.xlu0 %v380
    %v382 = vpop.xlane.xlu0 %381
    %v383 = vadd.f32 %v93, %v94
    %384 = vadd.xlane.f32.xlu0 %v383
    %v385 = vpop.xlane.xlu0 %384
    %v386 = vadd.f32 %v95, %v96
    %387 = vadd.xlane.f32.xlu0 %v386
    %v388 = vpop.xlane.xlu0 %387
    %v389 = vadd.f32 %v97, %v98
    %390 = vadd.xlane.f32.xlu0 %v389
    %v391 = vpop.xlane.xlu0 %390
    %v392 = vadd.f32 %v99, %v100
    %393 = vadd.xlane.f32.xlu0 %v392
    %v394 = vpop.xlane.xlu0 %393
    %v395 = vadd.f32 %v101, %v102
    %396 = vadd.xlane.f32.xlu0 %v395
    %v397 = vpop.xlane.xlu0 %396
    %v398 = vadd.f32 %v103, %v104
    %399 = vadd.xlane.f32.xlu0 %v398
    %v400 = vpop.xlane.xlu0 %399
    %v401 = vadd.f32 %v105, %v106
    %402 = vadd.xlane.f32.xlu0 %v401
    %v403 = vpop.xlane.xlu0 %402
    %v404 = vmul.f32 %v382, %v371
    %v405 = vmul.f32 %v385, %v371
    %v406 = vmul.f32 %v388, %v371
    %v407 = vmul.f32 %v391, %v371
    %v408 = vmul.f32 %v394, %v371
    %v409 = vmul.f32 %v397, %v371
    %v410 = vmul.f32 %v400, %v371
    %v411 = vmul.f32 %v403, %v371
    %v412 = vmul.f32 %v75, 0.00390625
    %v413 = vmul.f32 %v76, 0.00390625
    %v414 = vmul.f32 %v77, 0.00390625
    %v415 = vmul.f32 %v78, 0.00390625
    %v416 = vmul.f32 %v79, 0.00390625
    %v417 = vmul.f32 %v80, 0.00390625
    %v418 = vmul.f32 %v81, 0.00390625
    %v419 = vmul.f32 %v82, 0.00390625
    %v420 = vmul.f32 %v83, 0.00390625
    %v421 = vmul.f32 %v84, 0.00390625
    %v422 = vmul.f32 %v85, 0.00390625
    %v423 = vmul.f32 %v86, 0.00390625
    %v424 = vmul.f32 %v87, 0.00390625
    %v425 = vmul.f32 %v88, 0.00390625
    %v426 = vmul.f32 %v89, 0.00390625
    %v427 = vmul.f32 %v90, 0.00390625
    %v428 = vmul.f32 %v404, %v211
    %v429 = vmul.f32 %v404, %v212
    %v430 = vmul.f32 %v405, %v213
    %v431 = vmul.f32 %v405, %v214
    %v432 = vmul.f32 %v406, %v215
    %v433 = vmul.f32 %v406, %v216
    %v434 = vmul.f32 %v407, %v217
    %v435 = vmul.f32 %v407, %v218
    %v436 = vmul.f32 %v408, %v219
    %v437 = vmul.f32 %v408, %v220
    %v438 = vmul.f32 %v409, %v221
    %v439 = vmul.f32 %v409, %v222
    %v440 = vmul.f32 %v410, %v223
    %v441 = vmul.f32 %v410, %v224
    %v442 = vmul.f32 %v411, %v225
    %v443 = vmul.f32 %v411, %v226
    %v444 = vadd.f32 %v412, %v428
    %v445 = vadd.f32 %v413, %v429
    %v446 = vadd.f32 %v414, %v430
    %v447 = vadd.f32 %v415, %v431
    %v448 = vadd.f32 %v416, %v432
    %v449 = vadd.f32 %v417, %v433
    %v450 = vadd.f32 %v418, %v434
    %v451 = vadd.f32 %v419, %v435
    %v452 = vadd.f32 %v420, %v436
    %v453 = vadd.f32 %v421, %v437
    %v454 = vadd.f32 %v422, %v438
    %v455 = vadd.f32 %v423, %v439
    %v456 = vadd.f32 %v424, %v440
    %v457 = vadd.f32 %v425, %v441
    %v458 = vadd.f32 %v426, %v442
    %v459 = vadd.f32 %v427, %v443
    %v460 = vmul.f32 %v331, %v372
    %v461 = vmul.f32 %v332, %v372
    %v462 = vmul.f32 %v333, %v373
    %v463 = vmul.f32 %v334, %v373
    %v464 = vmul.f32 %v335, %v374
    %v465 = vmul.f32 %v336, %v374
    %v466 = vmul.f32 %v337, %v375
    %v467 = vmul.f32 %v338, %v375
    %v468 = vmul.f32 %v339, %v376
    %v469 = vmul.f32 %v340, %v376
    %v470 = vmul.f32 %v341, %v377
    %v471 = vmul.f32 %v342, %v377
    %v472 = vmul.f32 %v343, %v378
    %v473 = vmul.f32 %v344, %v378
    %v474 = vmul.f32 %v345, %v379
    %v475 = vmul.f32 %v346, %v379
    %v476 = vmul.f32 %v91, 0.00390625
    %v477 = vmul.f32 %v92, 0.00390625
    %v478 = vmul.f32 %v93, 0.00390625
    %v479 = vmul.f32 %v94, 0.00390625
    %v480 = vmul.f32 %v95, 0.00390625
    %v481 = vmul.f32 %v96, 0.00390625
    %v482 = vmul.f32 %v97, 0.00390625
    %v483 = vmul.f32 %v98, 0.00390625
    %v484 = vmul.f32 %v99, 0.00390625
    %v485 = vmul.f32 %v100, 0.00390625
    %v486 = vmul.f32 %v101, 0.00390625
    %v487 = vmul.f32 %v102, 0.00390625
    %v488 = vmul.f32 %v103, 0.00390625
    %v489 = vmul.f32 %v104, 0.00390625
    %v490 = vmul.f32 %v105, 0.00390625
    %v491 = vmul.f32 %v106, 0.00390625
    %v492 = vadd.f32 %v460, %v476
    %v493 = vadd.f32 %v461, %v477
    %v494 = vadd.f32 %v462, %v478
    %v495 = vadd.f32 %v463, %v479
    %v496 = vadd.f32 %v464, %v480
    %v497 = vadd.f32 %v465, %v481
    %v498 = vadd.f32 %v466, %v482
    %v499 = vadd.f32 %v467, %v483
    %v500 = vadd.f32 %v468, %v484
    %v501 = vadd.f32 %v469, %v485
    %v502 = vadd.f32 %v470, %v486
    %v503 = vadd.f32 %v471, %v487
    %v504 = vadd.f32 %v472, %v488
    %v505 = vadd.f32 %v473, %v489
    %v506 = vadd.f32 %v474, %v490
    %v507 = vadd.f32 %v475, %v491
    %v508 = vmul.f32 %v75, %v444
    %v509 = vmul.f32 %v76, %v445
    %v510 = vmul.f32 %v77, %v446
    %v511 = vmul.f32 %v78, %v447
    %v512 = vmul.f32 %v79, %v448
    %v513 = vmul.f32 %v80, %v449
    %v514 = vmul.f32 %v81, %v450
    %v515 = vmul.f32 %v82, %v451
    %v516 = vmul.f32 %v83, %v452
    %v517 = vmul.f32 %v84, %v453
    %v518 = vmul.f32 %v85, %v454
    %v519 = vmul.f32 %v86, %v455
    %v520 = vmul.f32 %v87, %v456
    %v521 = vmul.f32 %v88, %v457
    %v522 = vmul.f32 %v89, %v458
    %v523 = vmul.f32 %v90, %v459
    %v524 = vadd.f32 %v508, %v75
    %v525 = vadd.f32 %v509, %v76
    %v526 = vadd.f32 %v510, %v77
    %v527 = vadd.f32 %v511, %v78
    %v528 = vadd.f32 %v512, %v79
    %v529 = vadd.f32 %v513, %v80
    %v530 = vadd.f32 %v514, %v81
    %v531 = vadd.f32 %v515, %v82
    %v532 = vadd.f32 %v516, %v83
    %v533 = vadd.f32 %v517, %v84
    %v534 = vadd.f32 %v518, %v85
    %v535 = vadd.f32 %v519, %v86
    %v536 = vadd.f32 %v520, %v87
    %v537 = vadd.f32 %v521, %v88
    %v538 = vadd.f32 %v522, %v89
    %v539 = vadd.f32 %v523, %v90
    %v540 = vmul.f32 %v91, %v492
    %v541 = vmul.f32 %v92, %v493
    %v542 = vmul.f32 %v93, %v494
    %v543 = vmul.f32 %v94, %v495
    %v544 = vmul.f32 %v95, %v496
    %v545 = vmul.f32 %v96, %v497
    %v546 = vmul.f32 %v97, %v498
    %v547 = vmul.f32 %v98, %v499
    %v548 = vmul.f32 %v99, %v500
    %v549 = vmul.f32 %v100, %v501
    %v550 = vmul.f32 %v101, %v502
    %v551 = vmul.f32 %v102, %v503
    %v552 = vmul.f32 %v103, %v504
    %v553 = vmul.f32 %v104, %v505
    %v554 = vmul.f32 %v105, %v506
    %v555 = vmul.f32 %v106, %v507
    %v556 = vadd.f32 %v540, %v91
    %v557 = vadd.f32 %v541, %v92
    %v558 = vadd.f32 %v542, %v93
    %v559 = vadd.f32 %v543, %v94
    %v560 = vadd.f32 %v544, %v95
    %v561 = vadd.f32 %v545, %v96
    %v562 = vadd.f32 %v546, %v97
    %v563 = vadd.f32 %v547, %v98
    %v564 = vadd.f32 %v548, %v99
    %v565 = vadd.f32 %v549, %v100
    %v566 = vadd.f32 %v550, %v101
    %v567 = vadd.f32 %v551, %v102
    %v568 = vadd.f32 %v552, %v103
    %v569 = vadd.f32 %v553, %v104
    %v570 = vadd.f32 %v554, %v105
    %v571 = vadd.f32 %v555, %v106
    %v572 = vadd.f32 %v524, %v525
    %573 = vadd.xlane.f32.xlu0 %v572
    %v574 = vpop.xlane.xlu0 %573
    %v575 = vadd.f32 %v526, %v527
    %576 = vadd.xlane.f32.xlu0 %v575
    %v577 = vpop.xlane.xlu0 %576
    %v578 = vadd.f32 %v528, %v529
    %579 = vadd.xlane.f32.xlu0 %v578
    %v580 = vpop.xlane.xlu0 %579
    %v581 = vadd.f32 %v530, %v531
    %582 = vadd.xlane.f32.xlu0 %v581
    %v583 = vpop.xlane.xlu0 %582
    %v584 = vadd.f32 %v532, %v533
    %585 = vadd.xlane.f32.xlu0 %v584
    %v586 = vpop.xlane.xlu0 %585
    %v587 = vadd.f32 %v534, %v535
    %588 = vadd.xlane.f32.xlu0 %v587
    %v589 = vpop.xlane.xlu0 %588
    %v590 = vadd.f32 %v536, %v537
    %591 = vadd.xlane.f32.xlu0 %v590
    %v592 = vpop.xlane.xlu0 %591
    %v593 = vadd.f32 %v538, %v539
    %594 = vadd.xlane.f32.xlu0 %v593
    %v595 = vpop.xlane.xlu0 %594
    %v596 = vmul.f32 %v574, %v371
    %v597 = vmul.f32 %v577, %v371
    %v598 = vmul.f32 %v580, %v371
    %v599 = vmul.f32 %v583, %v371
    %v600 = vmul.f32 %v586, %v371
    %v601 = vmul.f32 %v589, %v371
    %v602 = vmul.f32 %v592, %v371
    %v603 = vmul.f32 %v595, %v371
    %v604 = vadd.f32 %v556, %v557
    %605 = vadd.xlane.f32.xlu0 %v604
    %v606 = vpop.xlane.xlu0 %605
    %v607 = vadd.f32 %v558, %v559
    %608 = vadd.xlane.f32.xlu0 %v607
    %v609 = vpop.xlane.xlu0 %608
    %v610 = vadd.f32 %v560, %v561
    %611 = vadd.xlane.f32.xlu0 %v610
    %v612 = vpop.xlane.xlu0 %611
    %v613 = vadd.f32 %v562, %v563
    %614 = vadd.xlane.f32.xlu0 %v613
    %v615 = vpop.xlane.xlu0 %614
    %v616 = vadd.f32 %v564, %v565
    %617 = vadd.xlane.f32.xlu0 %v616
    %v618 = vpop.xlane.xlu0 %617
    %v619 = vadd.f32 %v566, %v567
    %620 = vadd.xlane.f32.xlu0 %v619
    %v621 = vpop.xlane.xlu0 %620
    %v622 = vadd.f32 %v568, %v569
    %623 = vadd.xlane.f32.xlu0 %v622
    %v624 = vpop.xlane.xlu0 %623
    %v625 = vadd.f32 %v570, %v571
    %626 = vadd.xlane.f32.xlu0 %v625
    %v627 = vpop.xlane.xlu0 %626
    %v628 = vmul.f32 %v606, %v371
    %v629 = vmul.f32 %v609, %v371
    %v630 = vmul.f32 %v612, %v371
    %v631 = vmul.f32 %v615, %v371
    %v632 = vmul.f32 %v618, %v371
    %v633 = vmul.f32 %v621, %v371
    %v634 = vmul.f32 %v624, %v371
    %v635 = vmul.f32 %v627, %v371
    %v636 = vld [vmem:[#allocation7] sm:$0xf]
    %v637 = vld [vmem:[%s3] sm:$0xf]
    %v646 = vlaneseq
    %v647 = vand.u32 %v646, 127
    %v648 = vlaneseq
    %v649 = vshrl.u32 %v648, 7
    %v650 = vsub.s32 %v647, %v649
    %v651 = vrot.slane %v628, %v650
    %v652 = vadd.s32 %v647, 4294967288
    %v653 = vlaneseq
    %v654 = vshrl.u32 %v653, 7
    %v655 = vsub.s32 %v652, %v654
    %v656 = vrot.slane %v629, %v655
    %vm657 = vcmask 130112
    %v658 = vsel %vm657, %v656, %v651
    %v659 = vadd.s32 %v647, 4294967280
    %v660 = vlaneseq
    %v661 = vshrl.u32 %v660, 7
    %v662 = vsub.s32 %v659, %v661
    %v663 = vrot.slane %v630, %v662
    %vm664 = vcmask 195712
    %v665 = vsel %vm664, %v663, %v658
    %v666 = vadd.s32 %v647, 4294967272
    %v667 = vlaneseq
    %v668 = vshrl.u32 %v667, 7
    %v669 = vsub.s32 %v666, %v668
    %v670 = vrot.slane %v631, %v669
    %vm671 = vcmask 261312
    %v672 = vsel %vm671, %v670, %v665
    %v673 = vlaneseq
    %v674 = vshrl.u32 %v673, 7
    %v675 = vsub.s32 %v647, %v674
    %v676 = vrot.slane %v632, %v675
    %v677 = vlaneseq
    %v678 = vshrl.u32 %v677, 7
    %v679 = vsub.s32 %v652, %v678
    %v680 = vrot.slane %v633, %v679
    %v681 = vsel %vm657, %v680, %v676
    %v682 = vlaneseq
    %v683 = vshrl.u32 %v682, 7
    %v684 = vsub.s32 %v659, %v683
    %v685 = vrot.slane %v634, %v684
    %v686 = vsel %vm664, %v685, %v681
    %v687 = vlaneseq
    %v688 = vshrl.u32 %v687, 7
    %v689 = vsub.s32 %v666, %v688
    %v690 = vrot.slane %v635, %v689
    %v691 = vsel %vm671, %v690, %v686
    %vm692 = vcmask 1041409
    %v693 = vsel %vm692, %v691, %v672
    %vm694 = vcmask 261120
    %v695 = vsel %vm694, %v693, 0
    %v698 = vsel %vm694, %v637, 0
    %700 = vmatprep.subr.mxu0 0.0
    %701 = vmatpush1.xpose.msra.mxu0 0.0
    %702 = vmatprep.subr.mxu0 0.0
    %703 = vmatpush1.xpose.msra.mxu0 0.0
    %704 = vmatprep.subr.mxu0 0.0
    %705 = vmatpush1.xpose.msra.mxu0 0.0
    %706 = vmatprep.subr.mxu0 0.0
    %707 = vmatpush1.xpose.msra.mxu0 0.0
    %708 = vmatprep.subr.mxu0 0.0
    %709 = vmatpush1.xpose.msra.mxu0 0.0
    %710 = vmatprep.subr.mxu0 0.0
    %711 = vmatpush1.xpose.msra.mxu0 0.0
    %712 = vmatprep.subr.mxu0 0.0
    %713 = vmatpush1.xpose.msra.mxu0 0.0
    %714 = vmatprep.subr.mxu0 0.0
    %715 = vmatpush1.xpose.msra.mxu0 0.0
    %716 = vmatprep.subr.mxu0 0.0
    %717 = vmatpush1.xpose.msra.mxu0 0.0
    %718 = vmatprep.subr.mxu0 0.0
    %719 = vmatpush1.xpose.msra.mxu0 0.0
    %720 = vmatprep.subr.mxu0 0.0
    %721 = vmatpush1.xpose.msra.mxu0 0.0
    %722 = vmatprep.subr.mxu0 0.0
    %723 = vmatpush1.xpose.msra.mxu0 0.0
    %724 = vmatprep.subr.mxu0 0.0
    %725 = vmatpush1.xpose.msra.mxu0 0.0
    %726 = vmatprep.subr.mxu0 0.0
    %727 = vmatpush1.xpose.msra.mxu0 0.0
    %728 = vmatprep.subr.mxu0 0.0
    %729 = vmatpush1.xpose.msra.mxu0 0.0
    %730 = vmatprep.subr.mxu0 0.0
    %731 = vmatpush1.xpose.msra.mxu0 %v698
    %732 = vmatprep.subr.mxu0 0.0
    %733 = vmatpush2.xpose.msra.mxu0 0.0
    %734 = vmatprep.subr.mxu0 0.0
    %735 = vmatpush2.xpose.msra.mxu0 0.0
    %736 = vmatprep.subr.mxu0 0.0
    %737 = vmatpush2.xpose.msra.mxu0 0.0
    %738 = vmatprep.subr.mxu0 0.0
    %739 = vmatpush2.xpose.msra.mxu0 0.0
    %740 = vmatprep.subr.mxu0 0.0
    %741 = vmatpush2.xpose.msra.mxu0 0.0
    %742 = vmatprep.subr.mxu0 0.0
    %743 = vmatpush2.xpose.msra.mxu0 0.0
    %744 = vmatprep.subr.mxu0 0.0
    %745 = vmatpush2.xpose.msra.mxu0 0.0
    %746 = vmatprep.subr.mxu0 0.0
    %747 = vmatpush2.xpose.msra.mxu0 0.0
    %748 = vmatprep.subr.mxu0 0.0
    %749 = vmatpush2.xpose.msra.mxu0 0.0
    %750 = vmatprep.subr.mxu0 0.0
    %751 = vmatpush2.xpose.msra.mxu0 0.0
    %752 = vmatprep.subr.mxu0 0.0
    %753 = vmatpush2.xpose.msra.mxu0 0.0
    %754 = vmatprep.subr.mxu0 0.0
    %755 = vmatpush2.xpose.msra.mxu0 0.0
    %756 = vmatprep.subr.mxu0 0.0
    %757 = vmatpush2.xpose.msra.mxu0 0.0
    %758 = vmatprep.subr.mxu0 0.0
    %759 = vmatpush2.xpose.msra.mxu0 0.0
    %760 = vmatprep.subr.mxu0 0.0
    %761 = vmatpush2.xpose.msra.mxu0 0.0
    %762 = vmatprep.subr.mxu0 0.0
    %763 = vmatpush2.xpose.msra.mxu0 0.0
    %764 = vmatprep.mubr.f32.mxu0 0.0
    %765 = vmatmul.mubr.f32.gmra.mxu0 %v695
    %v766 = vpop.f32.mrf.mxu0
    %v767 = vadd.f32 0.0, %v766
    %v768 = vpop.f32.mrf.mxu0
    %769 = vdwg.mxu0
    %v778 = vlaneseq
    %v779 = vshrl.u32 %v778, 7
    %v780 = vsub.s32 %v647, %v779
    %v781 = vrot.slane %v596, %v780
    %v782 = vlaneseq
    %v783 = vshrl.u32 %v782, 7
    %v784 = vsub.s32 %v652, %v783
    %v785 = vrot.slane %v597, %v784
    %v786 = vsel %vm657, %v785, %v781
    %v787 = vlaneseq
    %v788 = vshrl.u32 %v787, 7
    %v789 = vsub.s32 %v659, %v788
    %v790 = vrot.slane %v598, %v789
    %v791 = vsel %vm664, %v790, %v786
    %v792 = vlaneseq
    %v793 = vshrl.u32 %v792, 7
    %v794 = vsub.s32 %v666, %v793
    %v795 = vrot.slane %v599, %v794
    %v796 = vsel %vm671, %v795, %v791
    %v797 = vlaneseq
    %v798 = vshrl.u32 %v797, 7
    %v799 = vsub.s32 %v647, %v798
    %v800 = vrot.slane %v600, %v799
    %v801 = vlaneseq
    %v802 = vshrl.u32 %v801, 7
    %v803 = vsub.s32 %v652, %v802
    %v804 = vrot.slane %v601, %v803
    %v805 = vsel %vm657, %v804, %v800
    %v806 = vlaneseq
    %v807 = vshrl.u32 %v806, 7
    %v808 = vsub.s32 %v659, %v807
    %v809 = vrot.slane %v602, %v808
    %v810 = vsel %vm664, %v809, %v805
    %v811 = vlaneseq
    %v812 = vshrl.u32 %v811, 7
    %v813 = vsub.s32 %v666, %v812
    %v814 = vrot.slane %v603, %v813
    %v815 = vsel %vm671, %v814, %v810
    %v816 = vsel %vm692, %v815, %v796
    %v817 = vsel %vm694, %v816, 0
    %v820 = vsel %vm694, %v636, 0
    %822 = vmatprep.subr.mxu0 0.0
    %823 = vmatpush1.xpose.msra.mxu0 0.0
    %824 = vmatprep.subr.mxu0 0.0
    %825 = vmatpush1.xpose.msra.mxu0 0.0
    %826 = vmatprep.subr.mxu0 0.0
    %827 = vmatpush1.xpose.msra.mxu0 0.0
    %828 = vmatprep.subr.mxu0 0.0
    %829 = vmatpush1.xpose.msra.mxu0 0.0
    %830 = vmatprep.subr.mxu0 0.0
    %831 = vmatpush1.xpose.msra.mxu0 0.0
    %832 = vmatprep.subr.mxu0 0.0
    %833 = vmatpush1.xpose.msra.mxu0 0.0
    %834 = vmatprep.subr.mxu0 0.0
    %835 = vmatpush1.xpose.msra.mxu0 0.0
    %836 = vmatprep.subr.mxu0 0.0
    %837 = vmatpush1.xpose.msra.mxu0 0.0
    %838 = vmatprep.subr.mxu0 0.0
    %839 = vmatpush1.xpose.msra.mxu0 0.0
    %840 = vmatprep.subr.mxu0 0.0
    %841 = vmatpush1.xpose.msra.mxu0 0.0
    %842 = vmatprep.subr.mxu0 0.0
    %843 = vmatpush1.xpose.msra.mxu0 0.0
    %844 = vmatprep.subr.mxu0 0.0
    %845 = vmatpush1.xpose.msra.mxu0 0.0
    %846 = vmatprep.subr.mxu0 0.0
    %847 = vmatpush1.xpose.msra.mxu0 0.0
    %848 = vmatprep.subr.mxu0 0.0
    %849 = vmatpush1.xpose.msra.mxu0 0.0
    %850 = vmatprep.subr.mxu0 0.0
    %851 = vmatpush1.xpose.msra.mxu0 0.0
    %852 = vmatprep.subr.mxu0 0.0
    %853 = vmatpush1.xpose.msra.mxu0 %v820
    %854 = vmatprep.subr.mxu0 0.0
    %855 = vmatpush2.xpose.msra.mxu0 0.0
    %856 = vmatprep.subr.mxu0 0.0
    %857 = vmatpush2.xpose.msra.mxu0 0.0
    %858 = vmatprep.subr.mxu0 0.0
    %859 = vmatpush2.xpose.msra.mxu0 0.0
    %860 = vmatprep.subr.mxu0 0.0
    %861 = vmatpush2.xpose.msra.mxu0 0.0
    %862 = vmatprep.subr.mxu0 0.0
    %863 = vmatpush2.xpose.msra.mxu0 0.0
    %864 = vmatprep.subr.mxu0 0.0
    %865 = vmatpush2.xpose.msra.mxu0 0.0
    %866 = vmatprep.subr.mxu0 0.0
    %867 = vmatpush2.xpose.msra.mxu0 0.0
    %868 = vmatprep.subr.mxu0 0.0
    %869 = vmatpush2.xpose.msra.mxu0 0.0
    %870 = vmatprep.subr.mxu0 0.0
    %871 = vmatpush2.xpose.msra.mxu0 0.0
    %872 = vmatprep.subr.mxu0 0.0
    %873 = vmatpush2.xpose.msra.mxu0 0.0
    %874 = vmatprep.subr.mxu0 0.0
    %875 = vmatpush2.xpose.msra.mxu0 0.0
    %876 = vmatprep.subr.mxu0 0.0
    %877 = vmatpush2.xpose.msra.mxu0 0.0
    %878 = vmatprep.subr.mxu0 0.0
    %879 = vmatpush2.xpose.msra.mxu0 0.0
    %880 = vmatprep.subr.mxu0 0.0
    %881 = vmatpush2.xpose.msra.mxu0 0.0
    %882 = vmatprep.subr.mxu0 0.0
    %883 = vmatpush2.xpose.msra.mxu0 0.0
    %884 = vmatprep.subr.mxu0 0.0
    %885 = vmatpush2.xpose.msra.mxu0 0.0
    %886 = vmatprep.mubr.f32.mxu0 0.0
    %887 = vmatmul.mubr.f32.gmra.mxu0 %v817
    %v888 = vpop.f32.mrf.mxu0
    %v889 = vadd.f32 %v767, %v888
    %v890 = vpop.f32.mrf.mxu0
    %891 = vdwg.mxu0
    %v892 = vmax.f32 %v889, 0.0
    %v893 = vld [vmem:[#allocation8] sm:$0xf]
    %vm894 = vcmask 31744
    %v896 = vsel %vm894, %v892, 0
    %vm898 = vcmask 1043456
    %v900 = vsel %vm898, %v893, 0
    %902 = vmatprep.subr.mxu0 0.0
    %903 = vmatpush1.msra.mxu0 0.0
    %904 = vmatprep.subr.mxu0 0.0
    %905 = vmatpush1.msra.mxu0 0.0
    %906 = vmatprep.subr.mxu0 0.0
    %907 = vmatpush1.msra.mxu0 0.0
    %908 = vmatprep.subr.mxu0 0.0
    %909 = vmatpush1.msra.mxu0 0.0
    %910 = vmatprep.subr.mxu0 0.0
    %911 = vmatpush1.msra.mxu0 0.0
    %912 = vmatprep.subr.mxu0 0.0
    %913 = vmatpush1.msra.mxu0 0.0
    %914 = vmatprep.subr.mxu0 0.0
    %915 = vmatpush1.msra.mxu0 0.0
    %916 = vmatprep.subr.mxu0 0.0
    %917 = vmatpush1.msra.mxu0 0.0
    %918 = vmatprep.subr.mxu0 0.0
    %919 = vmatpush1.msra.mxu0 0.0
    %920 = vmatprep.subr.mxu0 0.0
    %921 = vmatpush1.msra.mxu0 0.0
    %922 = vmatprep.subr.mxu0 0.0
    %923 = vmatpush1.msra.mxu0 0.0
    %924 = vmatprep.subr.mxu0 0.0
    %925 = vmatpush1.msra.mxu0 0.0
    %926 = vmatprep.subr.mxu0 0.0
    %927 = vmatpush1.msra.mxu0 0.0
    %928 = vmatprep.subr.mxu0 0.0
    %929 = vmatpush1.msra.mxu0 0.0
    %930 = vmatprep.subr.mxu0 0.0
    %931 = vmatpush1.msra.mxu0 0.0
    %932 = vmatprep.subr.mxu0 0.0
    %933 = vmatpush1.msra.mxu0 %v900
    %934 = vmatprep.subr.mxu0 0.0
    %935 = vmatpush2.msra.mxu0 0.0
    %936 = vmatprep.subr.mxu0 0.0
    %937 = vmatpush2.msra.mxu0 0.0
    %938 = vmatprep.subr.mxu0 0.0
    %939 = vmatpush2.msra.mxu0 0.0
    %940 = vmatprep.subr.mxu0 0.0
    %941 = vmatpush2.msra.mxu0 0.0
    %942 = vmatprep.subr.mxu0 0.0
    %943 = vmatpush2.msra.mxu0 0.0
    %944 = vmatprep.subr.mxu0 0.0
    %945 = vmatpush2.msra.mxu0 0.0
    %946 = vmatprep.subr.mxu0 0.0
    %947 = vmatpush2.msra.mxu0 0.0
    %948 = vmatprep.subr.mxu0 0.0
    %949 = vmatpush2.msra.mxu0 0.0
    %950 = vmatprep.subr.mxu0 0.0
    %951 = vmatpush2.msra.mxu0 0.0
    %952 = vmatprep.subr.mxu0 0.0
    %953 = vmatpush2.msra.mxu0 0.0
    %954 = vmatprep.subr.mxu0 0.0
    %955 = vmatpush2.msra.mxu0 0.0
    %956 = vmatprep.subr.mxu0 0.0
    %957 = vmatpush2.msra.mxu0 0.0
    %958 = vmatprep.subr.mxu0 0.0
    %959 = vmatpush2.msra.mxu0 0.0
    %960 = vmatprep.subr.mxu0 0.0
    %961 = vmatpush2.msra.mxu0 0.0
    %962 = vmatprep.subr.mxu0 0.0
    %963 = vmatpush2.msra.mxu0 0.0
    %964 = vmatprep.subr.mxu0 0.0
    %965 = vmatpush2.msra.mxu0 0.0
    %966 = vmatprep.mubr.f32.mxu0 0.0
    %967 = vmatmul.mubr.f32.gmra.mxu0 %v896
    %v968 = vpop.f32.mrf.mxu0
    %v969 = vadd.f32 0.0, %v968
    %v970 = vpop.f32.mrf.mxu0
    %971 = vdwg.mxu0
    %v972 = vand.u32 2147483647, %v969
    %v973 = vsub.f32 0.0, %v972
    %v974 = vmul.f32 %v973, 1.442695
    %v975 = vpow.pop %v974
    %vm976 = vcmp.ge.f32.partialorder %v969, 0.0
    %v977 = vsel %vm976, 1.0, %v975
    %v978 = vadd.f32 %v975, 1.0
    %v979 = vrcp.pop %v978
    %v980 = vmul.f32 %v977, %v979
    %v981 = vld [vmem:[%s5] sm:$0xf]
    %v983 = vsel %vm898, %v981, 0
    %985 = vmatprep.subr.mxu0 0.0
    %986 = vmatpush1.msra.mxu0 0.0
    %987 = vmatprep.subr.mxu0 0.0
    %988 = vmatpush1.msra.mxu0 0.0
    %989 = vmatprep.subr.mxu0 0.0
    %990 = vmatpush1.msra.mxu0 0.0
    %991 = vmatprep.subr.mxu0 0.0
    %992 = vmatpush1.msra.mxu0 0.0
    %993 = vmatprep.subr.mxu0 0.0
    %994 = vmatpush1.msra.mxu0 0.0
    %995 = vmatprep.subr.mxu0 0.0
    %996 = vmatpush1.msra.mxu0 0.0
    %997 = vmatprep.subr.mxu0 0.0
    %998 = vmatpush1.msra.mxu0 0.0
    %999 = vmatprep.subr.mxu0 0.0
    %1000 = vmatpush1.msra.mxu0 0.0
    %1001 = vmatprep.subr.mxu0 0.0
    %1002 = vmatpush1.msra.mxu0 0.0
    %1003 = vmatprep.subr.mxu0 0.0
    %1004 = vmatpush1.msra.mxu0 0.0
    %1005 = vmatprep.subr.mxu0 0.0
    %1006 = vmatpush1.msra.mxu0 0.0
    %1007 = vmatprep.subr.mxu0 0.0
    %1008 = vmatpush1.msra.mxu0 0.0
    %1009 = vmatprep.subr.mxu0 0.0
    %1010 = vmatpush1.msra.mxu0 0.0
    %1011 = vmatprep.subr.mxu0 0.0
    %1012 = vmatpush1.msra.mxu0 0.0
    %1013 = vmatprep.subr.mxu0 0.0
    %1014 = vmatpush1.msra.mxu0 0.0
    %1015 = vmatprep.subr.mxu0 0.0
    %1016 = vmatpush1.msra.mxu0 %v983
    %1017 = vmatprep.subr.mxu0 0.0
    %1018 = vmatpush2.msra.mxu0 0.0
    %1019 = vmatprep.subr.mxu0 0.0
    %1020 = vmatpush2.msra.mxu0 0.0
    %1021 = vmatprep.subr.mxu0 0.0
    %1022 = vmatpush2.msra.mxu0 0.0
    %1023 = vmatprep.subr.mxu0 0.0
    %1024 = vmatpush2.msra.mxu0 0.0
    %1025 = vmatprep.subr.mxu0 0.0
    %1026 = vmatpush2.msra.mxu0 0.0
    %1027 = vmatprep.subr.mxu0 0.0
    %1028 = vmatpush2.msra.mxu0 0.0
    %1029 = vmatprep.subr.mxu0 0.0
    %1030 = vmatpush2.msra.mxu0 0.0
    %1031 = vmatprep.subr.mxu0 0.0
    %1032 = vmatpush2.msra.mxu0 0.0
    %1033 = vmatprep.subr.mxu0 0.0
    %1034 = vmatpush2.msra.mxu0 0.0
    %1035 = vmatprep.subr.mxu0 0.0
    %1036 = vmatpush2.msra.mxu0 0.0
    %1037 = vmatprep.subr.mxu0 0.0
    %1038 = vmatpush2.msra.mxu0 0.0
    %1039 = vmatprep.subr.mxu0 0.0
    %1040 = vmatpush2.msra.mxu0 0.0
    %1041 = vmatprep.subr.mxu0 0.0
    %1042 = vmatpush2.msra.mxu0 0.0
    %1043 = vmatprep.subr.mxu0 0.0
    %1044 = vmatpush2.msra.mxu0 0.0
    %1045 = vmatprep.subr.mxu0 0.0
    %1046 = vmatpush2.msra.mxu0 0.0
    %1047 = vmatprep.subr.mxu0 0.0
    %1048 = vmatpush2.msra.mxu0 0.0
    %1049 = vmatprep.mubr.f32.mxu0 0.0
    %1050 = vmatmul.mubr.f32.gmra.mxu0 %v896
    %v1051 = vpop.f32.mrf.mxu0
    %v1052 = vadd.f32 0.0, %v1051
    %v1053 = vpop.f32.mrf.mxu0
    %1054 = vdwg.mxu0
    %v1055 = vand.u32 2147483647, %v1052
    %v1056 = vsub.f32 0.0, %v1055
    %v1057 = vmul.f32 %v1056, 1.442695
    %v1058 = vpow.pop %v1057
    %vm1059 = vcmp.ge.f32.partialorder %v1052, 0.0
    %v1060 = vsel %vm1059, 1.0, %v1058
    %v1061 = vadd.f32 %v1058, 1.0
    %v1062 = vrcp.pop %v1061
    %v1063 = vmul.f32 %v1060, %v1062
    %v1064 = vlaneseq
    %v1065 = vshrl.u32 %v1064, 7
    %v1066 = vsub.s32 0, %v1065
    %v1067 = vrot.slane %v980, %v1066
    %1069 = vbcast.lane.b32.xlu0 %v1067, 256
    %v1070 = vpop.permute.xlu0 %1069
    %s1072 = sor.u32 256, 8
    %1073 = vbcast.lane.b32.xlu0 %v1067, %s1072
    %v1074 = vpop.permute.xlu0 %1073
    %s1076 = sor.u32 256, 16
    %1077 = vbcast.lane.b32.xlu0 %v1067, %s1076
    %v1078 = vpop.permute.xlu0 %1077
    %s1080 = sor.u32 256, 24
    %1081 = vbcast.lane.b32.xlu0 %v1067, %s1080
    %v1082 = vpop.permute.xlu0 %1081
    %v1083 = vlaneseq
    %v1084 = vshrl.u32 %v1083, 7
    %v1085 = vsub.s32 1, %v1084
    %v1086 = vrot.slane %v980, %v1085
    %1088 = vbcast.lane.b32.xlu0 %v1086, 256
    %v1089 = vpop.permute.xlu0 %1088
    %s1091 = sor.u32 256, 8
    %1092 = vbcast.lane.b32.xlu0 %v1086, %s1091
    %v1093 = vpop.permute.xlu0 %1092
    %s1095 = sor.u32 256, 16
    %1096 = vbcast.lane.b32.xlu0 %v1086, %s1095
    %v1097 = vpop.permute.xlu0 %1096
    %s1099 = sor.u32 256, 24
    %1100 = vbcast.lane.b32.xlu0 %v1086, %s1099
    %v1101 = vpop.permute.xlu0 %1100
    %v1102 = vadd.f32 %v1070, 1.0
    %v1103 = vadd.f32 %v1074, 1.0
    %v1104 = vadd.f32 %v1078, 1.0
    %v1105 = vadd.f32 %v1082, 1.0
    %v1106 = vadd.f32 %v1089, 1.0
    %v1107 = vadd.f32 %v1093, 1.0
    %v1108 = vadd.f32 %v1097, 1.0
    %v1109 = vadd.f32 %v1101, 1.0
    %v1110 = vmul.f32 %v524, %v1102
    %v1111 = vmul.f32 %v525, %v1102
    %v1112 = vmul.f32 %v526, %v1103
    %v1113 = vmul.f32 %v527, %v1103
    %v1114 = vmul.f32 %v528, %v1104
    %v1115 = vmul.f32 %v529, %v1104
    %v1116 = vmul.f32 %v530, %v1105
    %v1117 = vmul.f32 %v531, %v1105
    %v1118 = vmul.f32 %v532, %v1106
    %v1119 = vmul.f32 %v533, %v1106
    %v1120 = vmul.f32 %v534, %v1107
    %v1121 = vmul.f32 %v535, %v1107
    %v1122 = vmul.f32 %v536, %v1108
    %v1123 = vmul.f32 %v537, %v1108
    %v1124 = vmul.f32 %v538, %v1109
    %v1125 = vmul.f32 %v539, %v1109
    %1126 = vst [vmem:[#allocation10] sm:$0xff] %v1110
    %1127 = vst [vmem:[#allocation10 + $0x8] sm:$0xff] %v1111
    %1128 = vst [vmem:[#allocation10 + $0x10] sm:$0xff] %v1112
    %1129 = vst [vmem:[#allocation10 + $0x18] sm:$0xff] %v1113
    %1130 = vst [vmem:[#allocation10 + $0x20] sm:$0xff] %v1114
    %1131 = vst [vmem:[#allocation10 + $0x28] sm:$0xff] %v1115
    %1132 = vst [vmem:[#allocation10 + $0x30] sm:$0xff] %v1116
    %1133 = vst [vmem:[#allocation10 + $0x38] sm:$0xff] %v1117
    %1134 = vst [vmem:[#allocation10 + $0x80] sm:$0xff] %v1118
    %1135 = vst [vmem:[#allocation10 + $0x88] sm:$0xff] %v1119
    %1136 = vst [vmem:[#allocation10 + $0x90] sm:$0xff] %v1120
    %1137 = vst [vmem:[#allocation10 + $0x98] sm:$0xff] %v1121
    %1138 = vst [vmem:[#allocation10 + $0xa0] sm:$0xff] %v1122
    %1139 = vst [vmem:[#allocation10 + $0xa8] sm:$0xff] %v1123
    %1140 = vst [vmem:[#allocation10 + $0xb0] sm:$0xff] %v1124
    %1141 = vst [vmem:[#allocation10 + $0xb8] sm:$0xff] %v1125
    %v1142 = vlaneseq
    %v1143 = vshrl.u32 %v1142, 7
    %v1144 = vsub.s32 0, %v1143
    %v1145 = vrot.slane %v1063, %v1144
    %1147 = vbcast.lane.b32.xlu0 %v1145, 256
    %v1148 = vpop.permute.xlu0 %1147
    %s1150 = sor.u32 256, 8
    %1151 = vbcast.lane.b32.xlu0 %v1145, %s1150
    %v1152 = vpop.permute.xlu0 %1151
    %s1154 = sor.u32 256, 16
    %1155 = vbcast.lane.b32.xlu0 %v1145, %s1154
    %v1156 = vpop.permute.xlu0 %1155
    %s1158 = sor.u32 256, 24
    %1159 = vbcast.lane.b32.xlu0 %v1145, %s1158
    %v1160 = vpop.permute.xlu0 %1159
    %v1161 = vlaneseq
    %v1162 = vshrl.u32 %v1161, 7
    %v1163 = vsub.s32 1, %v1162
    %v1164 = vrot.slane %v1063, %v1163
    %1166 = vbcast.lane.b32.xlu0 %v1164, 256
    %v1167 = vpop.permute.xlu0 %1166
    %s1169 = sor.u32 256, 8
    %1170 = vbcast.lane.b32.xlu0 %v1164, %s1169
    %v1171 = vpop.permute.xlu0 %1170
    %s1173 = sor.u32 256, 16
    %1174 = vbcast.lane.b32.xlu0 %v1164, %s1173
    %v1175 = vpop.permute.xlu0 %1174
    %s1177 = sor.u32 256, 24
    %1178 = vbcast.lane.b32.xlu0 %v1164, %s1177
    %v1179 = vpop.permute.xlu0 %1178
    %v1180 = vadd.f32 %v1148, 1.0
    %v1181 = vadd.f32 %v1152, 1.0
    %v1182 = vadd.f32 %v1156, 1.0
    %v1183 = vadd.f32 %v1160, 1.0
    %v1184 = vadd.f32 %v1167, 1.0
    %v1185 = vadd.f32 %v1171, 1.0
    %v1186 = vadd.f32 %v1175, 1.0
    %v1187 = vadd.f32 %v1179, 1.0
    %v1188 = vmul.f32 %v556, %v1180
    %v1189 = vmul.f32 %v557, %v1180
    %v1190 = vmul.f32 %v558, %v1181
    %v1191 = vmul.f32 %v559, %v1181
    %v1192 = vmul.f32 %v560, %v1182
    %v1193 = vmul.f32 %v561, %v1182
    %v1194 = vmul.f32 %v562, %v1183
    %v1195 = vmul.f32 %v563, %v1183
    %v1196 = vmul.f32 %v564, %v1184
    %v1197 = vmul.f32 %v565, %v1184
    %v1198 = vmul.f32 %v566, %v1185
    %v1199 = vmul.f32 %v567, %v1185
    %v1200 = vmul.f32 %v568, %v1186
    %v1201 = vmul.f32 %v569, %v1186
    %v1202 = vmul.f32 %v570, %v1187
    %v1203 = vmul.f32 %v571, %v1187
    %1204 = vst [vmem:[#allocation10 + $0x40] sm:$0xff] %v1188
    %1205 = vst [vmem:[#allocation10 + $0x48] sm:$0xff] %v1189
    %1206 = vst [vmem:[#allocation10 + $0x50] sm:$0xff] %v1190
    %1207 = vst [vmem:[#allocation10 + $0x58] sm:$0xff] %v1191
    %1208 = vst [vmem:[#allocation10 + $0x60] sm:$0xff] %v1192
    %1209 = vst [vmem:[#allocation10 + $0x68] sm:$0xff] %v1193
    %1210 = vst [vmem:[#allocation10 + $0x70] sm:$0xff] %v1194
    %1211 = vst [vmem:[#allocation10 + $0x78] sm:$0xff] %v1195
    %1212 = vst [vmem:[#allocation10 + $0xc0] sm:$0xff] %v1196
    %1213 = vst [vmem:[#allocation10 + $0xc8] sm:$0xff] %v1197
    %1214 = vst [vmem:[#allocation10 + $0xd0] sm:$0xff] %v1198
    %1215 = vst [vmem:[#allocation10 + $0xd8] sm:$0xff] %v1199
    %1216 = vst [vmem:[#allocation10 + $0xe0] sm:$0xff] %v1200
    %1217 = vst [vmem:[#allocation10 + $0xe8] sm:$0xff] %v1201
    %1218 = vst [vmem:[#allocation10 + $0xf0] sm:$0xff] %v1202
    %1219 = vst [vmem:[#allocation10 + $0xf8] sm:$0xff] %v1203
    // Predicated region
    $region42: #{tpu_custom_call.1} parent=1 // pred_check
      _
    $region43: #{tpu_custom_call.1} parent=1 // pred_check_branch
      %1221 = sbr.rel (0) target = $region45
    $region44: #{tpu_custom_call.1} parent=1 // pred_region
      %s1223 = ssub.s32 4096, 4096
      %1224 = vsyncadd [#allocation4], %s1223
      %s1225 = sshll.u32 [#allocation10], 4
      %s1226 = int_to_ptr.vmem [resolvable:$true] %s1225
      %1231 = dma.vmem_to_hbm [thread:$0]  %s1226, 4096, %s6, [#allocation4], 256, 256, 16
    $region45: #{tpu_custom_call.1} parent=1 // pred_fallthru
      _
    // Predicated region
    $region46: #{tpu_custom_call.1} parent=1 // pred_check
      _
    $region47: #{tpu_custom_call.1} parent=1 // pred_check_branch
      %1233 = sbr.rel (0) target = $region49
    $region48: #{tpu_custom_call.1} parent=1 // pred_region
      %1234 = dma.done [#allocation4], 4096
    $region49: #{tpu_custom_call.1} parent=1 // pred_fallthru
      _
    %1235 = vsyncpa [#allocation3], 1
    %1236 = vsyncpa [#allocation6], 1
    %1237 = vsyncpa [#allocation9], 1
    %1238 = vsyncpa [#allocation4], 1

</llo_original>
